<compile_context>
chip_gen: v6e
topology: v6e:2x2x1
jax: 0.10.0
libtpu: 0.0.40
codegen_flags: <defaults>
</compile_context>

<pallas_src>
import functools

import jax
import jax.numpy as jnp
from jax.experimental import pallas as pl
from jax.experimental.pallas import tpu as pltpu

# ------------------------- configuration (small, synthetic) -------------------------
B = 2                        # batch
N_WINDOWS = 4                # prior_len / number of windows in z_t
F_DIM = 8                    # args.f_dim
Z_DIM = 8                    # args.z_dim   (decoder input feature = f_dim + z_dim = 16)
OUTPUT_SIZE = 16             # decoder output feature size
OUTPUT_LENGTH = 4            # timesteps generated per window (static=False path)
HIDDEN_SIZES = (32, 64, 32)  # LSTM width = 32; fc: 32 -> 64 -> ReLU -> 32

D_IN = F_DIM + Z_DIM


def _r8(n):
    return ((n + 7) // 8) * 8


# ------------------------- parameter slab layout -------------------------
def param_layout(D, H, FH, OUT2):
    """Row offsets (all multiples of 8) into the single (rows, 4*H) parameter slab."""
    del FH, OUT2  # widths live in the lane dimension; only row counts matter here
    off, row = {}, 0
    for name, nrows in (("w_ih", H), ("w_hh", H), ("b_g", 1),
                        ("emb_w", D), ("emb_b", 1),
                        ("fc1_w", H), ("fc1_b", 1),
                        ("wp", HIDDEN_SIZES[1]), ("bp", 1)):
        off[name] = row
        row += _r8(nrows)
    off["rows"] = row
    return off


# ------------------------- the fused Pallas kernel -------------------------
def decoder_kernel(data_ref, params_ref, out_ref, *,
                   P, L, Bb, D, H, FH, OUT, off, z_rows):
    """Entire Decoder.forward in one kernel.

    data_ref   : packed slab; rows [0:P*B) = time-major z (row = t*B + b),
                 rows [z_rows : z_rows + L*P*B) = LSTM-input noise (row = (l*P + t)*B + b).
    params_ref : (rows, 4H) slab; see param_layout().  LSTM gates stacked [i, f, o, g].
    out_ref    : (L*P*B, 2*OUT)  = [mean | sigmoid(cov)*0.5], same (l, t, b) row order.
    """
    PB = P * Bb
    OUT2 = 2 * OUT

    # ---- unpack the parameter slab (static row/lane slices, loaded once) ----
    w_ih = params_ref[off["w_ih"]:off["w_ih"] + H, :]           # (H, 4H)
    w_hh = params_ref[off["w_hh"]:off["w_hh"] + H, :]           # (H, 4H)
    b_g = params_ref[off["b_g"]:off["b_g"] + 1, :]              # (1, 4H)  = b_ih + b_hh
    emb_w = params_ref[off["emb_w"]:off["emb_w"] + D, :H]       # (D, H)
    emb_b = params_ref[off["emb_b"]:off["emb_b"] + 1, :H]       # (1, H)
    fc1_w = params_ref[off["fc1_w"]:off["fc1_w"] + H, :FH]      # (H, FH)
    fc1_b = params_ref[off["fc1_b"]:off["fc1_b"] + 1, :FH]      # (1, FH)
    wp = params_ref[off["wp"]:off["wp"] + FH, :OUT2]            # (FH, 2*OUT) = fc2_w @ head_w
    bp = params_ref[off["bp"]:off["bp"] + 1, :OUT2]             # (1, 2*OUT)

    z = data_ref[0:PB, :D]                                      # (P*B, D)
    noise = data_ref[z_rows:z_rows + L * PB, :H]                # (L*P*B, H)

    # 1) embedding for every (window, batch) row -> initial h = c for ALL windows at once.
    emb = jnp.tanh(jnp.dot(z, emb_w, preferred_element_type=jnp.float32) + emb_b)    # (PB, H)

    # 2) hoisted input-side gates for every (step, window, batch) row; b_hh folded in.
    x_gates = jnp.dot(noise, w_ih, preferred_element_type=jnp.float32) + b_g         # (L*PB, 4H)

    # 3) recurrence: only L steps are serial; all P windows advance together.
    #    Gate stacking [i, f, o, g]: one sigmoid on 3H contiguous lanes + one tanh on H.
    h = emb
    c = emb
    hs = []
    for l in range(L):
        gates = x_gates[l * PB:(l + 1) * PB, :] + jnp.dot(
            h, w_hh, preferred_element_type=jnp.float32)                             # (PB, 4H)
        sig = jax.nn.sigmoid(gates[:, :3 * H])                                        # i | f | o
        g_g = jnp.tanh(gates[:, 3 * H:])
        c = sig[:, H:2 * H] * c + sig[:, :H] * g_g
        h = sig[:, 2 * H:3 * H] * jnp.tanh(c)
        hs.append(h)
    rnn_out = jnp.concatenate(hs, axis=0) if L > 1 else hs[0]                         # (L*PB, H)

    # 4) fc1 -> ReLU -> fused (fc2 . head); sigmoid*0.5 applied to the cov half in-kernel.
    fc_h = jnp.maximum(
        jnp.dot(rnn_out, fc1_w, preferred_element_type=jnp.float32) + fc1_b, 0.0)     # (L*PB, FH)
    head = jnp.dot(fc_h, wp, preferred_element_type=jnp.float32) + bp                 # (L*PB, 2*OUT)
    out_ref[...] = jnp.concatenate(
        [head[:, :OUT], jax.nn.sigmoid(head[:, OUT:]) * 0.5], axis=-1)


# ------------------------- parameter init (deterministic, synthetic) -------------------------
def init_params(key):
    ks = iter(jax.random.split(key, 16))

    def w(shape, scale=0.1):
        return scale * jax.random.normal(next(ks), shape, jnp.float32)

    def b(shape):
        return jnp.zeros(shape, jnp.float32)

    h0, h1, h2 = HIDDEN_SIZES
    p = {}
    # embedding: Linear(f_dim + z_dim -> h0), Tanh
    p['emb_w'], p['emb_b'] = w((D_IN, h0)), b((1, h0))
    # LSTM(h0 -> h0); gates stacked [i, f, o, g] along output columns -> (h0, 4*h0) = (32, 128)
    # TODO(synk): real torch LSTM weights are (4H, H) in [i, f, g, o] order; they would need a
    # transpose + column reorder before packing (synthetic init here, so this is definitional).
    p['lstm_wih'], p['lstm_whh'] = w((h0, 4 * h0)), w((h0, 4 * h0))
    p['lstm_bih'], p['lstm_bhh'] = b((1, 4 * h0)), b((1, 4 * h0))
    # fc: Linear(h0 -> h1) -> ReLU -> Linear(h1 -> h2)   (final ReLU dropped, per spec)
    p['fc1_w'], p['fc1_b'] = w((h0, h1)), b((1, h1))
    p['fc2_w'], p['fc2_b'] = w((h1, h2)), b((1, h2))
    # mean_gen / cov_gen fused column-wise -> (h2, 2*OUTPUT_SIZE)
    p['head_w'], p['head_b'] = w((h2, 2 * OUTPUT_SIZE)), b((1, 2 * OUTPUT_SIZE))
    return p


def pack_params(p):
    """Pack all decoder parameters into one (rows, 128) f32 slab (single HBM->VMEM DMA)."""
    h0, h1, _ = HIDDEN_SIZES
    OUT2 = 2 * OUTPUT_SIZE
    off = param_layout(D_IN, h0, h1, OUT2)
    # algebraic fusion of fc2 and the mean/cov head (no nonlinearity between them)
    wp = p['fc2_w'] @ p['head_w']                        # (h1, 2*OUT)
    bp = p['fc2_b'] @ p['head_w'] + p['head_b']          # (1, 2*OUT)
    b_g = p['lstm_bih'] + p['lstm_bhh']                  # (1, 4*h0)
    slab = jnp.zeros((off['rows'], 4 * h0), jnp.float32)
    slab = slab.at[off['w_ih']:off['w_ih'] + h0, :].set(p['lstm_wih'])
    slab = slab.at[off['w_hh']:off['w_hh'] + h0, :].set(p['lstm_whh'])
    slab = slab.at[off['b_g']:off['b_g'] + 1, :].set(b_g)
    slab = slab.at[off['emb_w']:off['emb_w'] + D_IN, :h0].set(p['emb_w'])
    slab = slab.at[off['emb_b']:off['emb_b'] + 1, :h0].set(p['emb_b'])
    slab = slab.at[off['fc1_w']:off['fc1_w'] + h0, :h1].set(p['fc1_w'])
    slab = slab.at[off['fc1_b']:off['fc1_b'] + 1, :h1].set(p['fc1_b'])
    slab = slab.at[off['wp']:off['wp'] + h1, :OUT2].set(wp)
    slab = slab.at[off['bp']:off['bp'] + 1, :OUT2].set(bp)
    return slab


# ------------------------- forward wrapper -------------------------
@functools.partial(jax.jit, static_argnames=("static",))
def decoder_forward(param_slab, z_t, key, static=False):
    """Returns (loc, scale) of the output Normal distribution.

    z_t: (batch, n_windows, f_dim + z_dim). static=True uses a single RNN step per window.
    """
    Bb, P, D = z_t.shape
    H, FH, _ = HIDDEN_SIZES
    OUT = OUTPUT_SIZE
    L = 1 if static else OUTPUT_LENGTH
    PB = P * Bb
    off = param_layout(D, H, FH, 2 * OUT)
    z_rows = _r8(PB)
    W = max(D, H)

    # time-major z (row = t*B + b) and step-major noise (row = (l*P + t)*B + b), packed into
    # one data slab so the kernel needs a single input DMA besides the parameter slab.
    z_tm = jnp.transpose(z_t, (1, 0, 2)).reshape(PB, D)
    noise = jax.random.normal(key, (L * PB, H), jnp.float32)   # torch.randn equivalent
    data = jnp.zeros((z_rows + L * PB, W), jnp.float32)
    data = data.at[:PB, :D].set(z_tm)
    data = data.at[z_rows:, :H].set(noise)

    kernel = functools.partial(decoder_kernel, P=P, L=L, Bb=Bb, D=D, H=H, FH=FH,
                               OUT=OUT, off=off, z_rows=z_rows)
    out_flat = pl.pallas_call(
        kernel,
        out_shape=jax.ShapeDtypeStruct((L * PB, 2 * OUT), jnp.float32),
        in_specs=[pl.BlockSpec(memory_space=pltpu.MemorySpace.VMEM),
                  pl.BlockSpec(memory_space=pltpu.MemorySpace.VMEM)],
        out_specs=pl.BlockSpec(memory_space=pltpu.MemorySpace.VMEM),
    )(data, param_slab)

    # rows are (step l, window t, batch b); torch time ordering is (window t, step l).
    out = jnp.transpose(out_flat.reshape(L, P, Bb, 2 * OUT),
                        (2, 1, 0, 3)).reshape(Bb, P * L, 2 * OUT)
    x_mean = out[..., :OUT]
    x_scale = out[..., OUT:]           # already sigmoid(cov_gen) * 0.5
    # TODO(synk): torch.distributions.Normal has no Pallas/JAX equivalent; the distribution is
    # represented by its (loc, scale) tensors.
    return x_mean, x_scale


if __name__ == "__main__":
    root = jax.random.PRNGKey(0)
    k_param, k_data, k_noise, k_noise_s = jax.random.split(root, 4)

    params = init_params(k_param)
    param_slab = pack_params(params)
    z_t = jax.random.normal(k_data, (B, N_WINDOWS, F_DIM + Z_DIM), jnp.float32)

    # static=False path (the main reconstruction path)
    x_mean, x_scale = decoder_forward(param_slab, z_t, k_noise, static=False)
    jax.block_until_ready((x_mean, x_scale))
    assert x_mean.shape == (B, N_WINDOWS * OUTPUT_LENGTH, OUTPUT_SIZE)
    assert x_scale.shape == (B, N_WINDOWS * OUTPUT_LENGTH, OUTPUT_SIZE)

    # static=True path (one step per window)
    xm_s, xs_s = decoder_forward(param_slab, z_t, k_noise_s, static=True)
    jax.block_until_ready((xm_s, xs_s))
    assert xm_s.shape == (B, N_WINDOWS, OUTPUT_SIZE)
    assert xs_s.shape == (B, N_WINDOWS, OUTPUT_SIZE)

    assert bool(jnp.all(jnp.isfinite(x_mean)))
    assert bool(jnp.all(jnp.isfinite(x_scale)))
    assert bool(jnp.all((x_scale >= 0.0) & (x_scale <= 0.5)))   # sigmoid(.) * 0.5 in [0, 0.5]
    assert bool(jnp.all(jnp.isfinite(xm_s)))
    assert bool(jnp.all(jnp.isfinite(xs_s)))
    print("KERNEL_OK")
</pallas_src>

<mosaic_0001>
module attributes {stable_mosaic.version = 11 : i64} {
  func.func @decoder_kernel(%arg0: memref<40x32xf32, #tpu.memory_space<vmem>>, %arg1: memref<208x128xf32, #tpu.memory_space<vmem>>, %arg2: memref<32x32xf32, #tpu.memory_space<vmem>>) attributes {dimension_semantics = [], scalar_prefetch = 0 : i64, scratch_operands = 0 : i64, tpu.core_type = #tpu.core_type<tc>} {
    %c0 = arith.constant 0 : index
    %c0_0 = arith.constant 0 : index
    %0 = vector.load %arg1[%c0, %c0_0] : memref<208x128xf32, #tpu.memory_space<vmem>>, vector<32x128xf32>
    %c32 = arith.constant 32 : index
    %c0_1 = arith.constant 0 : index
    %1 = vector.load %arg1[%c32, %c0_1] : memref<208x128xf32, #tpu.memory_space<vmem>>, vector<32x128xf32>
    %c64 = arith.constant 64 : index
    %c0_2 = arith.constant 0 : index
    %2 = vector.load %arg1[%c64, %c0_2] : memref<208x128xf32, #tpu.memory_space<vmem>>, vector<1x128xf32>
    %c72 = arith.constant 72 : index
    %c0_3 = arith.constant 0 : index
    %3 = vector.load %arg1[%c72, %c0_3] : memref<208x128xf32, #tpu.memory_space<vmem>>, vector<16x32xf32>
    %c88 = arith.constant 88 : index
    %c0_4 = arith.constant 0 : index
    %4 = vector.load %arg1[%c88, %c0_4] : memref<208x128xf32, #tpu.memory_space<vmem>>, vector<1x32xf32>
    %c96 = arith.constant 96 : index
    %c0_5 = arith.constant 0 : index
    %5 = vector.load %arg1[%c96, %c0_5] : memref<208x128xf32, #tpu.memory_space<vmem>>, vector<32x64xf32>
    %c128 = arith.constant 128 : index
    %c0_6 = arith.constant 0 : index
    %6 = vector.load %arg1[%c128, %c0_6] : memref<208x128xf32, #tpu.memory_space<vmem>>, vector<1x64xf32>
    %c136 = arith.constant 136 : index
    %c0_7 = arith.constant 0 : index
    %7 = vector.load %arg1[%c136, %c0_7] : memref<208x128xf32, #tpu.memory_space<vmem>>, vector<64x32xf32>
    %c200 = arith.constant 200 : index
    %c0_8 = arith.constant 0 : index
    %8 = vector.load %arg1[%c200, %c0_8] : memref<208x128xf32, #tpu.memory_space<vmem>>, vector<1x32xf32>
    %c0_9 = arith.constant 0 : index
    %c0_10 = arith.constant 0 : index
    %9 = vector.load %arg0[%c0_9, %c0_10] : memref<40x32xf32, #tpu.memory_space<vmem>>, vector<8x16xf32>
    %c8 = arith.constant 8 : index
    %c0_11 = arith.constant 0 : index
    %10 = vector.load %arg0[%c8, %c0_11] : memref<40x32xf32, #tpu.memory_space<vmem>>, vector<32x32xf32>
    %cst = arith.constant dense<0.000000e+00> : vector<8x32xf32>
    %11 = tpu.matmul %9, %3, %cst {dimension_numbers = #tpu.dot_dimension_numbers<[1], [0], [0], [1], [0, 0, 1, 1], [], []>} : vector<8x16xf32>, vector<16x32xf32>, vector<8x32xf32> -> vector<8x32xf32>
    %12 = vector.broadcast %4 : vector<1x32xf32> to vector<8x32xf32>
    %13 = arith.addf %11, %12 : vector<8x32xf32>
    %14 = math.tanh %13 : vector<8x32xf32>
    %cst_12 = arith.constant dense<0.000000e+00> : vector<32x128xf32>
    %15 = tpu.matmul %10, %0, %cst_12 {dimension_numbers = #tpu.dot_dimension_numbers<[1], [0], [0], [1], [0, 0, 1, 1], [], []>} : vector<32x32xf32>, vector<32x128xf32>, vector<32x128xf32> -> vector<32x128xf32>
    %16 = vector.broadcast %2 : vector<1x128xf32> to vector<32x128xf32>
    %17 = arith.addf %15, %16 : vector<32x128xf32>
    %18 = vector.extract_strided_slice %17 {offsets = [0, 0], sizes = [8, 128], strides = [1, 1]} : vector<32x128xf32> to vector<8x128xf32>
    %cst_13 = arith.constant dense<0.000000e+00> : vector<8x128xf32>
    %19 = tpu.matmul %14, %1, %cst_13 {dimension_numbers = #tpu.dot_dimension_numbers<[1], [0], [0], [1], [0, 0, 1, 1], [], []>} : vector<8x32xf32>, vector<32x128xf32>, vector<8x128xf32> -> vector<8x128xf32>
    %20 = arith.addf %18, %19 : vector<8x128xf32>
    %21 = vector.extract_strided_slice %20 {offsets = [0, 0], sizes = [8, 96], strides = [1, 1]} : vector<8x128xf32> to vector<8x96xf32>
    %22 = arith.negf %21 : vector<8x96xf32>
    %23 = math.exp %22 : vector<8x96xf32>
    %cst_14 = arith.constant 1.000000e+00 : f32
    %24 = vector.broadcast %cst_14 : f32 to vector<8x96xf32>
    %25 = arith.addf %24, %23 : vector<8x96xf32>
    %26 = arith.divf %24, %25 : vector<8x96xf32>
    %27 = vector.extract_strided_slice %20 {offsets = [0, 96], sizes = [8, 32], strides = [1, 1]} : vector<8x128xf32> to vector<8x32xf32>
    %28 = math.tanh %27 : vector<8x32xf32>
    %29 = vector.extract_strided_slice %26 {offsets = [0, 32], sizes = [8, 32], strides = [1, 1]} : vector<8x96xf32> to vector<8x32xf32>
    %30 = arith.mulf %29, %14 : vector<8x32xf32>
    %31 = vector.extract_strided_slice %26 {offsets = [0, 0], sizes = [8, 32], strides = [1, 1]} : vector<8x96xf32> to vector<8x32xf32>
    %32 = arith.mulf %31, %28 : vector<8x32xf32>
    %33 = arith.addf %30, %32 : vector<8x32xf32>
    %34 = vector.extract_strided_slice %26 {offsets = [0, 64], sizes = [8, 32], strides = [1, 1]} : vector<8x96xf32> to vector<8x32xf32>
    %35 = math.tanh %33 : vector<8x32xf32>
    %36 = arith.mulf %34, %35 : vector<8x32xf32>
    %37 = vector.extract_strided_slice %17 {offsets = [8, 0], sizes = [8, 128], strides = [1, 1]} : vector<32x128xf32> to vector<8x128xf32>
    %cst_15 = arith.constant dense<0.000000e+00> : vector<8x128xf32>
    %38 = tpu.matmul %36, %1, %cst_15 {dimension_numbers = #tpu.dot_dimension_numbers<[1], [0], [0], [1], [0, 0, 1, 1], [], []>} : vector<8x32xf32>, vector<32x128xf32>, vector<8x128xf32> -> vector<8x128xf32>
    %39 = arith.addf %37, %38 : vector<8x128xf32>
    %40 = vector.extract_strided_slice %39 {offsets = [0, 0], sizes = [8, 96], strides = [1, 1]} : vector<8x128xf32> to vector<8x96xf32>
    %41 = arith.negf %40 : vector<8x96xf32>
    %42 = math.exp %41 : vector<8x96xf32>
    %cst_16 = arith.constant 1.000000e+00 : f32
    %43 = vector.broadcast %cst_16 : f32 to vector<8x96xf32>
    %44 = arith.addf %43, %42 : vector<8x96xf32>
    %45 = arith.divf %43, %44 : vector<8x96xf32>
    %46 = vector.extract_strided_slice %39 {offsets = [0, 96], sizes = [8, 32], strides = [1, 1]} : vector<8x128xf32> to vector<8x32xf32>
    %47 = math.tanh %46 : vector<8x32xf32>
    %48 = vector.extract_strided_slice %45 {offsets = [0, 32], sizes = [8, 32], strides = [1, 1]} : vector<8x96xf32> to vector<8x32xf32>
    %49 = arith.mulf %48, %33 : vector<8x32xf32>
    %50 = vector.extract_strided_slice %45 {offsets = [0, 0], sizes = [8, 32], strides = [1, 1]} : vector<8x96xf32> to vector<8x32xf32>
    %51 = arith.mulf %50, %47 : vector<8x32xf32>
    %52 = arith.addf %49, %51 : vector<8x32xf32>
    %53 = vector.extract_strided_slice %45 {offsets = [0, 64], sizes = [8, 32], strides = [1, 1]} : vector<8x96xf32> to vector<8x32xf32>
    %54 = math.tanh %52 : vector<8x32xf32>
    %55 = arith.mulf %53, %54 : vector<8x32xf32>
    %56 = vector.extract_strided_slice %17 {offsets = [16, 0], sizes = [8, 128], strides = [1, 1]} : vector<32x128xf32> to vector<8x128xf32>
    %cst_17 = arith.constant dense<0.000000e+00> : vector<8x128xf32>
    %57 = tpu.matmul %55, %1, %cst_17 {dimension_numbers = #tpu.dot_dimension_numbers<[1], [0], [0], [1], [0, 0, 1, 1], [], []>} : vector<8x32xf32>, vector<32x128xf32>, vector<8x128xf32> -> vector<8x128xf32>
    %58 = arith.addf %56, %57 : vector<8x128xf32>
    %59 = vector.extract_strided_slice %58 {offsets = [0, 0], sizes = [8, 96], strides = [1, 1]} : vector<8x128xf32> to vector<8x96xf32>
    %60 = arith.negf %59 : vector<8x96xf32>
    %61 = math.exp %60 : vector<8x96xf32>
    %cst_18 = arith.constant 1.000000e+00 : f32
    %62 = vector.broadcast %cst_18 : f32 to vector<8x96xf32>
    %63 = arith.addf %62, %61 : vector<8x96xf32>
    %64 = arith.divf %62, %63 : vector<8x96xf32>
    %65 = vector.extract_strided_slice %58 {offsets = [0, 96], sizes = [8, 32], strides = [1, 1]} : vector<8x128xf32> to vector<8x32xf32>
    %66 = math.tanh %65 : vector<8x32xf32>
    %67 = vector.extract_strided_slice %64 {offsets = [0, 32], sizes = [8, 32], strides = [1, 1]} : vector<8x96xf32> to vector<8x32xf32>
    %68 = arith.mulf %67, %52 : vector<8x32xf32>
    %69 = vector.extract_strided_slice %64 {offsets = [0, 0], sizes = [8, 32], strides = [1, 1]} : vector<8x96xf32> to vector<8x32xf32>
    %70 = arith.mulf %69, %66 : vector<8x32xf32>
    %71 = arith.addf %68, %70 : vector<8x32xf32>
    %72 = vector.extract_strided_slice %64 {offsets = [0, 64], sizes = [8, 32], strides = [1, 1]} : vector<8x96xf32> to vector<8x32xf32>
    %73 = math.tanh %71 : vector<8x32xf32>
    %74 = arith.mulf %72, %73 : vector<8x32xf32>
    %75 = vector.extract_strided_slice %17 {offsets = [24, 0], sizes = [8, 128], strides = [1, 1]} : vector<32x128xf32> to vector<8x128xf32>
    %cst_19 = arith.constant dense<0.000000e+00> : vector<8x128xf32>
    %76 = tpu.matmul %74, %1, %cst_19 {dimension_numbers = #tpu.dot_dimension_numbers<[1], [0], [0], [1], [0, 0, 1, 1], [], []>} : vector<8x32xf32>, vector<32x128xf32>, vector<8x128xf32> -> vector<8x128xf32>
    %77 = arith.addf %75, %76 : vector<8x128xf32>
    %78 = vector.extract_strided_slice %77 {offsets = [0, 0], sizes = [8, 96], strides = [1, 1]} : vector<8x128xf32> to vector<8x96xf32>
    %79 = arith.negf %78 : vector<8x96xf32>
    %80 = math.exp %79 : vector<8x96xf32>
    %cst_20 = arith.constant 1.000000e+00 : f32
    %81 = vector.broadcast %cst_20 : f32 to vector<8x96xf32>
    %82 = arith.addf %81, %80 : vector<8x96xf32>
    %83 = arith.divf %81, %82 : vector<8x96xf32>
    %84 = vector.extract_strided_slice %77 {offsets = [0, 96], sizes = [8, 32], strides = [1, 1]} : vector<8x128xf32> to vector<8x32xf32>
    %85 = math.tanh %84 : vector<8x32xf32>
    %86 = vector.extract_strided_slice %83 {offsets = [0, 32], sizes = [8, 32], strides = [1, 1]} : vector<8x96xf32> to vector<8x32xf32>
    %87 = arith.mulf %86, %71 : vector<8x32xf32>
    %88 = vector.extract_strided_slice %83 {offsets = [0, 0], sizes = [8, 32], strides = [1, 1]} : vector<8x96xf32> to vector<8x32xf32>
    %89 = arith.mulf %88, %85 : vector<8x32xf32>
    %90 = arith.addf %87, %89 : vector<8x32xf32>
    %91 = vector.extract_strided_slice %83 {offsets = [0, 64], sizes = [8, 32], strides = [1, 1]} : vector<8x96xf32> to vector<8x32xf32>
    %92 = math.tanh %90 : vector<8x32xf32>
    %93 = arith.mulf %91, %92 : vector<8x32xf32>
    %94 = tpu.concatenate %36, %55, %74, %93 in 0 : vector<8x32xf32>, vector<8x32xf32>, vector<8x32xf32>, vector<8x32xf32> -> vector<32x32xf32>
    %cst_21 = arith.constant dense<0.000000e+00> : vector<32x64xf32>
    %95 = tpu.matmul %94, %5, %cst_21 {dimension_numbers = #tpu.dot_dimension_numbers<[1], [0], [0], [1], [0, 0, 1, 1], [], []>} : vector<32x32xf32>, vector<32x64xf32>, vector<32x64xf32> -> vector<32x64xf32>
    %96 = vector.broadcast %6 : vector<1x64xf32> to vector<32x64xf32>
    %97 = arith.addf %95, %96 : vector<32x64xf32>
    %cst_22 = arith.constant 0.000000e+00 : f32
    %98 = vector.broadcast %cst_22 : f32 to vector<32x64xf32>
    %99 = arith.maximumf %97, %98 : vector<32x64xf32>
    %cst_23 = arith.constant dense<0.000000e+00> : vector<32x32xf32>
    %100 = tpu.matmul %99, %7, %cst_23 {dimension_numbers = #tpu.dot_dimension_numbers<[1], [0], [0], [1], [0, 0, 1, 1], [], []>} : vector<32x64xf32>, vector<64x32xf32>, vector<32x32xf32> -> vector<32x32xf32>
    %101 = vector.broadcast %8 : vector<1x32xf32> to vector<32x32xf32>
    %102 = arith.addf %100, %101 : vector<32x32xf32>
    %103 = vector.extract_strided_slice %102 {offsets = [0, 0], sizes = [32, 16], strides = [1, 1]} : vector<32x32xf32> to vector<32x16xf32>
    %104 = vector.extract_strided_slice %102 {offsets = [0, 16], sizes = [32, 16], strides = [1, 1]} : vector<32x32xf32> to vector<32x16xf32>
    %105 = arith.negf %104 : vector<32x16xf32>
    %106 = math.exp %105 : vector<32x16xf32>
    %cst_24 = arith.constant 1.000000e+00 : f32
    %107 = vector.broadcast %cst_24 : f32 to vector<32x16xf32>
    %108 = arith.addf %107, %106 : vector<32x16xf32>
    %109 = arith.divf %107, %108 : vector<32x16xf32>
    %cst_25 = arith.constant 5.000000e-01 : f32
    %110 = vector.broadcast %cst_25 : f32 to vector<32x16xf32>
    %111 = arith.mulf %109, %110 : vector<32x16xf32>
    %112 = tpu.concatenate %103, %111 in 1 : vector<32x16xf32>, vector<32x16xf32> -> vector<32x32xf32>
    %c0_26 = arith.constant 0 : index
    %c0_27 = arith.constant 0 : index
    %113 = vector.load %arg2[%c0_26, %c0_27] : memref<32x32xf32, #tpu.memory_space<vmem>>, vector<32x32xf32>
    tpu.vector_store %arg2[%c0_26, %c0_27], %112 {strides = array<i32>} : memref<32x32xf32, #tpu.memory_space<vmem>>, vector<32x32xf32>,
    return
  }
}

</mosaic_0001>

<llo_original>
// kernel: decoder_forward.1
$region0: #{decoder_forward.1}
  #allocation0 [shape = 'u32[]', space=smem, size = 0x4, offset = 0x4, fixed_abs, tag = 'smem constant byte address 0x4 - core index']
  #allocation1 [shape = 'u32[144,128]{1,0:T(1,128)}', space=vmem, size = 0x12000, scoped, tag = 'internal scratch']
  %s0 = inlined_call_operand.vmem [shape: f32[40,32], index: 0, kind: input, shape index: {}]
  %s1 = inlined_call_operand.hbm [shape: f32[208,128], index: 1, kind: input, shape index: {}]
  %s2 = inlined_call_operand.vmem [shape: f32[32,32], index: 2, kind: output, shape index: {}]
  %s3 = sld [smem:[#allocation0]]
  $region22: #{decoder_forward.1} parent=0
    _
  %s5 = ssub.s32 1, %s3
  %s6 = scalar_select 0, %s5, %s3
  $region1: #{decoder_forward.1} parent=0
    #allocation2 [shape = 'u8[106496]{0}', space=vmem, size = 0x1a000, scoped, tag = 'input window, operand 1, single buffered']
    #allocation3 [shape = 's32[1]{0}', space=sflag, size = 0x4, scoped, tag = 'scoped memory for decoder_forward.1']
    %7 = vsyncpa [#allocation3], 0
    // Predicated region
    $region2: #{decoder_forward.1} parent=1 // pred_check
      _
    $region3: #{decoder_forward.1} parent=1 // pred_check_branch
      %9 = sbr.rel (0) target = $region5
    $region4: #{decoder_forward.1} parent=1 // pred_region
      _
    $region5: #{decoder_forward.1} parent=1 // pred_fallthru
      _
    // Predicated region
    $region6: #{decoder_forward.1} parent=1 // pred_check
      _
    $region7: #{decoder_forward.1} parent=1 // pred_check_branch
      %11 = sbr.rel (0) target = $region9
    $region8: #{decoder_forward.1} parent=1 // pred_region
      %s13 = ssub.s32 3328, 3328
      %14 = vsyncadd [#allocation3], %s13
      %s15 = sshll.u32 [#allocation2], 4
      %s16 = int_to_ptr.vmem [resolvable:$true] %s15
      %21 = dma.hbm_to_vmem [thread:$0]  %s1, 3328, %s16, [#allocation3], 128, 128, 8
    $region9: #{decoder_forward.1} parent=1 // pred_fallthru
      _
    // Predicated region
    $region10: #{decoder_forward.1} parent=1 // pred_check
      _
    $region11: #{decoder_forward.1} parent=1 // pred_check_branch
      %23 = sbr.rel (0) target = $region13
    $region12: #{decoder_forward.1} parent=1 // pred_region
      %24 = dma.done [#allocation3], 3328
    $region13: #{decoder_forward.1} parent=1 // pred_fallthru
      _
    %v25 = vld [vmem:[#allocation2] sm:$0xff]
    %v26 = vld [vmem:[#allocation2 + $0x8] sm:$0xff]
    %v27 = vld [vmem:[#allocation2 + $0x10] sm:$0xff]
    %v28 = vld [vmem:[#allocation2 + $0x18] sm:$0xff]
    %v29 = vld [vmem:[#allocation2 + $0x20] sm:$0xff]
    %v30 = vld [vmem:[#allocation2 + $0x28] sm:$0xff]
    %v31 = vld [vmem:[#allocation2 + $0x30] sm:$0xff]
    %v32 = vld [vmem:[#allocation2 + $0x38] sm:$0xff]
    %v33 = vld [vmem:[#allocation2 + $0x40] sm:$0x1]
    %v34 = vld [vmem:[#allocation2 + $0x48] sm:$0xff]
    %v35 = vld [vmem:[#allocation2 + $0x50] sm:$0xff]
    %v36 = vld [vmem:[#allocation2 + $0x58] sm:$0x1]
    %v37 = vld [vmem:[#allocation2 + $0x60] sm:$0xff]
    %v38 = vld [vmem:[#allocation2 + $0x68] sm:$0xff]
    %v39 = vld [vmem:[#allocation2 + $0x70] sm:$0xff]
    %v40 = vld [vmem:[#allocation2 + $0x78] sm:$0xff]
    %v41 = vld [vmem:[#allocation2 + $0x80] sm:$0x1]
    %v42 = vld [vmem:[#allocation2 + $0x88] sm:$0xff]
    %v43 = vld [vmem:[#allocation2 + $0x90] sm:$0xff]
    %v44 = vld [vmem:[#allocation2 + $0x98] sm:$0xff]
    %v45 = vld [vmem:[#allocation2 + $0xa0] sm:$0xff]
    %v46 = vld [vmem:[#allocation2 + $0xa8] sm:$0xff]
    %v47 = vld [vmem:[#allocation2 + $0xb0] sm:$0xff]
    %v48 = vld [vmem:[#allocation2 + $0xb8] sm:$0xff]
    %v49 = vld [vmem:[#allocation2 + $0xc0] sm:$0xff]
    %v50 = vld [vmem:[#allocation2 + $0xc8] sm:$0x1]
    %v51 = vld [vmem:[%s0] sm:$0xff]
    %v52 = vld [vmem:[%s0 + $0x8] sm:$0xff]
    %v53 = vld [vmem:[%s0 + $0x10] sm:$0xff]
    %v54 = vld [vmem:[%s0 + $0x18] sm:$0xff]
    %v55 = vld [vmem:[%s0 + $0x20] sm:$0xff]
    %v56 = vlaneseq
    %v57 = vshrl.u32 %v56, 7
    %v58 = vsub.s32 0, %v57
    %v59 = vrot.slane %v36, %v58
    %vm60 = vcmask 130048
    %v62 = vsel %vm60, %v51, 0
    %64 = vmatprep.subr.mxu0 0.0
    %65 = vmatpush1.msra.mxu0 0.0
    %66 = vmatprep.subr.mxu0 0.0
    %67 = vmatpush1.msra.mxu0 0.0
    %68 = vmatprep.subr.mxu0 0.0
    %69 = vmatpush1.msra.mxu0 0.0
    %70 = vmatprep.subr.mxu0 0.0
    %71 = vmatpush1.msra.mxu0 0.0
    %72 = vmatprep.subr.mxu0 0.0
    %73 = vmatpush1.msra.mxu0 0.0
    %74 = vmatprep.subr.mxu0 0.0
    %75 = vmatpush1.msra.mxu0 0.0
    %76 = vmatprep.subr.mxu0 0.0
    %77 = vmatpush1.msra.mxu0 0.0
    %78 = vmatprep.subr.mxu0 0.0
    %79 = vmatpush1.msra.mxu0 0.0
    %80 = vmatprep.subr.mxu0 0.0
    %81 = vmatpush1.msra.mxu0 0.0
    %82 = vmatprep.subr.mxu0 0.0
    %83 = vmatpush1.msra.mxu0 0.0
    %84 = vmatprep.subr.mxu0 0.0
    %85 = vmatpush1.msra.mxu0 0.0
    %86 = vmatprep.subr.mxu0 0.0
    %87 = vmatpush1.msra.mxu0 0.0
    %88 = vmatprep.subr.mxu0 0.0
    %89 = vmatpush1.msra.mxu0 0.0
    %90 = vmatprep.subr.mxu0 0.0
    %91 = vmatpush1.msra.mxu0 0.0
    %92 = vmatprep.subr.mxu0 0.0
    %93 = vmatpush1.msra.mxu0 %v35
    %94 = vmatprep.subr.mxu0 0.0
    %95 = vmatpush1.msra.mxu0 %v34
    %96 = vmatprep.subr.mxu0 0.0
    %97 = vmatpush2.msra.mxu0 0.0
    %98 = vmatprep.subr.mxu0 0.0
    %99 = vmatpush2.msra.mxu0 0.0
    %100 = vmatprep.subr.mxu0 0.0
    %101 = vmatpush2.msra.mxu0 0.0
    %102 = vmatprep.subr.mxu0 0.0
    %103 = vmatpush2.msra.mxu0 0.0
    %104 = vmatprep.subr.mxu0 0.0
    %105 = vmatpush2.msra.mxu0 0.0
    %106 = vmatprep.subr.mxu0 0.0
    %107 = vmatpush2.msra.mxu0 0.0
    %108 = vmatprep.subr.mxu0 0.0
    %109 = vmatpush2.msra.mxu0 0.0
    %110 = vmatprep.subr.mxu0 0.0
    %111 = vmatpush2.msra.mxu0 0.0
    %112 = vmatprep.subr.mxu0 0.0
    %113 = vmatpush2.msra.mxu0 0.0
    %114 = vmatprep.subr.mxu0 0.0
    %115 = vmatpush2.msra.mxu0 0.0
    %116 = vmatprep.subr.mxu0 0.0
    %117 = vmatpush2.msra.mxu0 0.0
    %118 = vmatprep.subr.mxu0 0.0
    %119 = vmatpush2.msra.mxu0 0.0
    %120 = vmatprep.subr.mxu0 0.0
    %121 = vmatpush2.msra.mxu0 0.0
    %122 = vmatprep.subr.mxu0 0.0
    %123 = vmatpush2.msra.mxu0 0.0
    %124 = vmatprep.subr.mxu0 0.0
    %125 = vmatpush2.msra.mxu0 0.0
    %126 = vmatprep.subr.mxu0 0.0
    %127 = vmatpush2.msra.mxu0 0.0
    %128 = vmatprep.mubr.f32.mxu0 0.0
    %129 = vmatmul.mubr.f32.gmra.mxu0 %v62
    %v130 = vpop.f32.mrf.mxu0
    %v131 = vadd.f32 %v59, %v130
    %v132 = vpop.f32.mrf.mxu0
    %133 = vdwg.mxu0
    %v134 = vtanh.pop %v131
    %v135 = vlaneseq
    %v136 = vshrl.u32 %v135, 7
    %v137 = vsub.s32 0, %v136
    %v138 = vrot.slane %v33, %v137
    %vm139 = vcmask 261120
    %v141 = vsel %vm139, %v52, 0
    %v144 = vsel %vm139, %v53, 0
    %v147 = vsel %vm139, %v54, 0
    %v150 = vsel %vm139, %v55, 0
    %152 = vmatprep.subr.mxu0 0.0
    %153 = vmatpush1.msra.mxu0 0.0
    %154 = vmatprep.subr.mxu0 0.0
    %155 = vmatpush1.msra.mxu0 0.0
    %156 = vmatprep.subr.mxu0 0.0
    %157 = vmatpush1.msra.mxu0 0.0
    %158 = vmatprep.subr.mxu0 0.0
    %159 = vmatpush1.msra.mxu0 0.0
    %160 = vmatprep.subr.mxu0 0.0
    %161 = vmatpush1.msra.mxu0 0.0
    %162 = vmatprep.subr.mxu0 0.0
    %163 = vmatpush1.msra.mxu0 0.0
    %164 = vmatprep.subr.mxu0 0.0
    %165 = vmatpush1.msra.mxu0 0.0
    %166 = vmatprep.subr.mxu0 0.0
    %167 = vmatpush1.msra.mxu0 0.0
    %168 = vmatprep.subr.mxu0 0.0
    %169 = vmatpush1.msra.mxu0 0.0
    %170 = vmatprep.subr.mxu0 0.0
    %171 = vmatpush1.msra.mxu0 0.0
    %172 = vmatprep.subr.mxu0 0.0
    %173 = vmatpush1.msra.mxu0 0.0
    %174 = vmatprep.subr.mxu0 0.0
    %175 = vmatpush1.msra.mxu0 0.0
    %176 = vmatprep.subr.mxu0 0.0
    %177 = vmatpush1.msra.mxu0 %v28
    %178 = vmatprep.subr.mxu0 0.0
    %179 = vmatpush1.msra.mxu0 %v27
    %180 = vmatprep.subr.mxu0 0.0
    %181 = vmatpush1.msra.mxu0 %v26
    %182 = vmatprep.subr.mxu0 0.0
    %183 = vmatpush1.msra.mxu0 %v25
    %184 = vmatprep.subr.mxu0 0.0
    %185 = vmatpush2.msra.mxu0 0.0
    %186 = vmatprep.subr.mxu0 0.0
    %187 = vmatpush2.msra.mxu0 0.0
    %188 = vmatprep.subr.mxu0 0.0
    %189 = vmatpush2.msra.mxu0 0.0
    %190 = vmatprep.subr.mxu0 0.0
    %191 = vmatpush2.msra.mxu0 0.0
    %192 = vmatprep.subr.mxu0 0.0
    %193 = vmatpush2.msra.mxu0 0.0
    %194 = vmatprep.subr.mxu0 0.0
    %195 = vmatpush2.msra.mxu0 0.0
    %196 = vmatprep.subr.mxu0 0.0
    %197 = vmatpush2.msra.mxu0 0.0
    %198 = vmatprep.subr.mxu0 0.0
    %199 = vmatpush2.msra.mxu0 0.0
    %200 = vmatprep.subr.mxu0 0.0
    %201 = vmatpush2.msra.mxu0 0.0
    %202 = vmatprep.subr.mxu0 0.0
    %203 = vmatpush2.msra.mxu0 0.0
    %204 = vmatprep.subr.mxu0 0.0
    %205 = vmatpush2.msra.mxu0 0.0
    %206 = vmatprep.subr.mxu0 0.0
    %207 = vmatpush2.msra.mxu0 0.0
    %208 = vmatprep.subr.mxu0 0.0
    %209 = vmatpush2.msra.mxu0 0.0
    %210 = vmatprep.subr.mxu0 0.0
    %211 = vmatpush2.msra.mxu0 0.0
    %212 = vmatprep.subr.mxu0 0.0
    %213 = vmatpush2.msra.mxu0 0.0
    %214 = vmatprep.subr.mxu0 0.0
    %215 = vmatpush2.msra.mxu0 0.0
    %216 = vmatprep.mubr.f32.mxu0 0.0
    %217 = vmatmul.mubr.f32.gmra.mxu0 %v141
    %v218 = vpop.f32.mrf.mxu0
    %v219 = vadd.f32 %v138, %v218
    %v220 = vpop.f32.mrf.mxu0
    %221 = vmatprep.mubr.f32.mxu0 0.0
    %222 = vmatmul.mubr.f32.gmra.mxu0 %v144
    %v223 = vpop.f32.mrf.mxu0
    %v224 = vadd.f32 %v138, %v223
    %v225 = vpop.f32.mrf.mxu0
    %226 = vmatprep.mubr.f32.mxu0 0.0
    %227 = vmatmul.mubr.f32.gmra.mxu0 %v147
    %v228 = vpop.f32.mrf.mxu0
    %v229 = vadd.f32 %v138, %v228
    %v230 = vpop.f32.mrf.mxu0
    %231 = vmatprep.mubr.f32.mxu0 0.0
    %232 = vmatmul.mubr.f32.gmra.mxu0 %v150
    %v233 = vpop.f32.mrf.mxu0
    %v234 = vadd.f32 %v138, %v233
    %v235 = vpop.f32.mrf.mxu0
    %236 = vdwg.mxu0
    %v238 = vsel %vm139, %v134, 0
    %240 = vmatprep.subr.mxu0 0.0
    %241 = vmatpush1.msra.mxu0 0.0
    %242 = vmatprep.subr.mxu0 0.0
    %243 = vmatpush1.msra.mxu0 0.0
    %244 = vmatprep.subr.mxu0 0.0
    %245 = vmatpush1.msra.mxu0 0.0
    %246 = vmatprep.subr.mxu0 0.0
    %247 = vmatpush1.msra.mxu0 0.0
    %248 = vmatprep.subr.mxu0 0.0
    %249 = vmatpush1.msra.mxu0 0.0
    %250 = vmatprep.subr.mxu0 0.0
    %251 = vmatpush1.msra.mxu0 0.0
    %252 = vmatprep.subr.mxu0 0.0
    %253 = vmatpush1.msra.mxu0 0.0
    %254 = vmatprep.subr.mxu0 0.0
    %255 = vmatpush1.msra.mxu0 0.0
    %256 = vmatprep.subr.mxu0 0.0
    %257 = vmatpush1.msra.mxu0 0.0
    %258 = vmatprep.subr.mxu0 0.0
    %259 = vmatpush1.msra.mxu0 0.0
    %260 = vmatprep.subr.mxu0 0.0
    %261 = vmatpush1.msra.mxu0 0.0
    %262 = vmatprep.subr.mxu0 0.0
    %263 = vmatpush1.msra.mxu0 0.0
    %264 = vmatprep.subr.mxu0 0.0
    %265 = vmatpush1.msra.mxu0 %v32
    %266 = vmatprep.subr.mxu0 0.0
    %267 = vmatpush1.msra.mxu0 %v31
    %268 = vmatprep.subr.mxu0 0.0
    %269 = vmatpush1.msra.mxu0 %v30
    %270 = vmatprep.subr.mxu0 0.0
    %271 = vmatpush1.msra.mxu0 %v29
    %272 = vmatprep.subr.mxu0 0.0
    %273 = vmatpush2.msra.mxu0 0.0
    %274 = vmatprep.subr.mxu0 0.0
    %275 = vmatpush2.msra.mxu0 0.0
    %276 = vmatprep.subr.mxu0 0.0
    %277 = vmatpush2.msra.mxu0 0.0
    %278 = vmatprep.subr.mxu0 0.0
    %279 = vmatpush2.msra.mxu0 0.0
    %280 = vmatprep.subr.mxu0 0.0
    %281 = vmatpush2.msra.mxu0 0.0
    %282 = vmatprep.subr.mxu0 0.0
    %283 = vmatpush2.msra.mxu0 0.0
    %284 = vmatprep.subr.mxu0 0.0
    %285 = vmatpush2.msra.mxu0 0.0
    %286 = vmatprep.subr.mxu0 0.0
    %287 = vmatpush2.msra.mxu0 0.0
    %288 = vmatprep.subr.mxu0 0.0
    %289 = vmatpush2.msra.mxu0 0.0
    %290 = vmatprep.subr.mxu0 0.0
    %291 = vmatpush2.msra.mxu0 0.0
    %292 = vmatprep.subr.mxu0 0.0
    %293 = vmatpush2.msra.mxu0 0.0
    %294 = vmatprep.subr.mxu0 0.0
    %295 = vmatpush2.msra.mxu0 0.0
    %296 = vmatprep.subr.mxu0 0.0
    %297 = vmatpush2.msra.mxu0 0.0
    %298 = vmatprep.subr.mxu0 0.0
    %299 = vmatpush2.msra.mxu0 0.0
    %300 = vmatprep.subr.mxu0 0.0
    %301 = vmatpush2.msra.mxu0 0.0
    %302 = vmatprep.subr.mxu0 0.0
    %303 = vmatpush2.msra.mxu0 0.0
    %304 = vmatprep.mubr.f32.mxu0 0.0
    %305 = vmatmul.mubr.f32.gmra.mxu0 %v238
    %v306 = vpop.f32.mrf.mxu0
    %v307 = vadd.f32 0.0, %v306
    %v308 = vpop.f32.mrf.mxu0
    %309 = vdwg.mxu0
    %v310 = vadd.f32 %v219, %v307
    %v311 = vxor.u32 %v310, 2147483648
    %v312 = vmul.f32 %v311, 1.442695
    %v313 = vpow.pop %v312
    %v314 = vadd.f32 %v313, 1.0
    %v315 = vrcp.pop %v314
    %v316 = vmul.f32 1.0, %v315
    %v317 = vtanh.pop %v310
    %318 = vrot.lane.b32.xlu0 %v134, 32
    %v319 = vpop.permute.xlu0 %318
    %v321 = vmul.f32 %v316, %v319
    %323 = vrot.lane.b32.xlu0 %v317, 32
    %v324 = vpop.permute.xlu0 %323
    %v326 = vmul.f32 %v316, %v324
    %328 = vrot.lane.b32.xlu0 %v326, 32
    %v329 = vpop.permute.xlu0 %328
    %v331 = vadd.f32 %v321, %v329
    %v332 = vtanh.pop %v331
    %334 = vrot.lane.b32.xlu0 %v332, 32
    %v335 = vpop.permute.xlu0 %334
    %v337 = vmul.f32 %v316, %v335
    %339 = vrot.lane.b32.xlu0 %v337, 64
    %v340 = vpop.permute.xlu0 %339
    %v341 = vsel %vm139, %v340, 0
    %343 = vmatprep.subr.mxu0 0.0
    %344 = vmatpush1.msra.mxu0 0.0
    %345 = vmatprep.subr.mxu0 0.0
    %346 = vmatpush1.msra.mxu0 0.0
    %347 = vmatprep.subr.mxu0 0.0
    %348 = vmatpush1.msra.mxu0 0.0
    %349 = vmatprep.subr.mxu0 0.0
    %350 = vmatpush1.msra.mxu0 0.0
    %351 = vmatprep.subr.mxu0 0.0
    %352 = vmatpush1.msra.mxu0 0.0
    %353 = vmatprep.subr.mxu0 0.0
    %354 = vmatpush1.msra.mxu0 0.0
    %355 = vmatprep.subr.mxu0 0.0
    %356 = vmatpush1.msra.mxu0 0.0
    %357 = vmatprep.subr.mxu0 0.0
    %358 = vmatpush1.msra.mxu0 0.0
    %359 = vmatprep.subr.mxu0 0.0
    %360 = vmatpush1.msra.mxu0 0.0
    %361 = vmatprep.subr.mxu0 0.0
    %362 = vmatpush1.msra.mxu0 0.0
    %363 = vmatprep.subr.mxu0 0.0
    %364 = vmatpush1.msra.mxu0 0.0
    %365 = vmatprep.subr.mxu0 0.0
    %366 = vmatpush1.msra.mxu0 0.0
    %367 = vmatprep.subr.mxu0 0.0
    %368 = vmatpush1.msra.mxu0 %v32
    %369 = vmatprep.subr.mxu0 0.0
    %370 = vmatpush1.msra.mxu0 %v31
    %371 = vmatprep.subr.mxu0 0.0
    %372 = vmatpush1.msra.mxu0 %v30
    %373 = vmatprep.subr.mxu0 0.0
    %374 = vmatpush1.msra.mxu0 %v29
    %375 = vmatprep.subr.mxu0 0.0
    %376 = vmatpush2.msra.mxu0 0.0
    %377 = vmatprep.subr.mxu0 0.0
    %378 = vmatpush2.msra.mxu0 0.0
    %379 = vmatprep.subr.mxu0 0.0
    %380 = vmatpush2.msra.mxu0 0.0
    %381 = vmatprep.subr.mxu0 0.0
    %382 = vmatpush2.msra.mxu0 0.0
    %383 = vmatprep.subr.mxu0 0.0
    %384 = vmatpush2.msra.mxu0 0.0
    %385 = vmatprep.subr.mxu0 0.0
    %386 = vmatpush2.msra.mxu0 0.0
    %387 = vmatprep.subr.mxu0 0.0
    %388 = vmatpush2.msra.mxu0 0.0
    %389 = vmatprep.subr.mxu0 0.0
    %390 = vmatpush2.msra.mxu0 0.0
    %391 = vmatprep.subr.mxu0 0.0
    %392 = vmatpush2.msra.mxu0 0.0
    %393 = vmatprep.subr.mxu0 0.0
    %394 = vmatpush2.msra.mxu0 0.0
    %395 = vmatprep.subr.mxu0 0.0
    %396 = vmatpush2.msra.mxu0 0.0
    %397 = vmatprep.subr.mxu0 0.0
    %398 = vmatpush2.msra.mxu0 0.0
    %399 = vmatprep.subr.mxu0 0.0
    %400 = vmatpush2.msra.mxu0 0.0
    %401 = vmatprep.subr.mxu0 0.0
    %402 = vmatpush2.msra.mxu0 0.0
    %403 = vmatprep.subr.mxu0 0.0
    %404 = vmatpush2.msra.mxu0 0.0
    %405 = vmatprep.subr.mxu0 0.0
    %406 = vmatpush2.msra.mxu0 0.0
    %407 = vmatprep.mubr.f32.mxu0 0.0
    %408 = vmatmul.mubr.f32.gmra.mxu0 %v341
    %v409 = vpop.f32.mrf.mxu0
    %v410 = vadd.f32 0.0, %v409
    %v411 = vpop.f32.mrf.mxu0
    %412 = vdwg.mxu0
    %v413 = vadd.f32 %v224, %v410
    %v414 = vxor.u32 %v413, 2147483648
    %v415 = vmul.f32 %v414, 1.442695
    %v416 = vpow.pop %v415
    %v417 = vadd.f32 %v416, 1.0
    %v418 = vrcp.pop %v417
    %v419 = vmul.f32 1.0, %v418
    %v420 = vtanh.pop %v413
    %v421 = vmul.f32 %v419, %v331
    %423 = vrot.lane.b32.xlu0 %v420, 32
    %v424 = vpop.permute.xlu0 %423
    %v426 = vmul.f32 %v419, %v424
    %428 = vrot.lane.b32.xlu0 %v426, 32
    %v429 = vpop.permute.xlu0 %428
    %v431 = vadd.f32 %v421, %v429
    %v432 = vtanh.pop %v431
    %434 = vrot.lane.b32.xlu0 %v432, 32
    %v435 = vpop.permute.xlu0 %434
    %v437 = vmul.f32 %v419, %v435
    %439 = vrot.lane.b32.xlu0 %v437, 64
    %v440 = vpop.permute.xlu0 %439
    %v441 = vsel %vm139, %v440, 0
    %443 = vmatprep.subr.mxu0 0.0
    %444 = vmatpush1.msra.mxu0 0.0
    %445 = vmatprep.subr.mxu0 0.0
    %446 = vmatpush1.msra.mxu0 0.0
    %447 = vmatprep.subr.mxu0 0.0
    %448 = vmatpush1.msra.mxu0 0.0
    %449 = vmatprep.subr.mxu0 0.0
    %450 = vmatpush1.msra.mxu0 0.0
    %451 = vmatprep.subr.mxu0 0.0
    %452 = vmatpush1.msra.mxu0 0.0
    %453 = vmatprep.subr.mxu0 0.0
    %454 = vmatpush1.msra.mxu0 0.0
    %455 = vmatprep.subr.mxu0 0.0
    %456 = vmatpush1.msra.mxu0 0.0
    %457 = vmatprep.subr.mxu0 0.0
    %458 = vmatpush1.msra.mxu0 0.0
    %459 = vmatprep.subr.mxu0 0.0
    %460 = vmatpush1.msra.mxu0 0.0
    %461 = vmatprep.subr.mxu0 0.0
    %462 = vmatpush1.msra.mxu0 0.0
    %463 = vmatprep.subr.mxu0 0.0
    %464 = vmatpush1.msra.mxu0 0.0
    %465 = vmatprep.subr.mxu0 0.0
    %466 = vmatpush1.msra.mxu0 0.0
    %467 = vmatprep.subr.mxu0 0.0
    %468 = vmatpush1.msra.mxu0 %v32
    %469 = vmatprep.subr.mxu0 0.0
    %470 = vmatpush1.msra.mxu0 %v31
    %471 = vmatprep.subr.mxu0 0.0
    %472 = vmatpush1.msra.mxu0 %v30
    %473 = vmatprep.subr.mxu0 0.0
    %474 = vmatpush1.msra.mxu0 %v29
    %475 = vmatprep.subr.mxu0 0.0
    %476 = vmatpush2.msra.mxu0 0.0
    %477 = vmatprep.subr.mxu0 0.0
    %478 = vmatpush2.msra.mxu0 0.0
    %479 = vmatprep.subr.mxu0 0.0
    %480 = vmatpush2.msra.mxu0 0.0
    %481 = vmatprep.subr.mxu0 0.0
    %482 = vmatpush2.msra.mxu0 0.0
    %483 = vmatprep.subr.mxu0 0.0
    %484 = vmatpush2.msra.mxu0 0.0
    %485 = vmatprep.subr.mxu0 0.0
    %486 = vmatpush2.msra.mxu0 0.0
    %487 = vmatprep.subr.mxu0 0.0
    %488 = vmatpush2.msra.mxu0 0.0
    %489 = vmatprep.subr.mxu0 0.0
    %490 = vmatpush2.msra.mxu0 0.0
    %491 = vmatprep.subr.mxu0 0.0
    %492 = vmatpush2.msra.mxu0 0.0
    %493 = vmatprep.subr.mxu0 0.0
    %494 = vmatpush2.msra.mxu0 0.0
    %495 = vmatprep.subr.mxu0 0.0
    %496 = vmatpush2.msra.mxu0 0.0
    %497 = vmatprep.subr.mxu0 0.0
    %498 = vmatpush2.msra.mxu0 0.0
    %499 = vmatprep.subr.mxu0 0.0
    %500 = vmatpush2.msra.mxu0 0.0
    %501 = vmatprep.subr.mxu0 0.0
    %502 = vmatpush2.msra.mxu0 0.0
    %503 = vmatprep.subr.mxu0 0.0
    %504 = vmatpush2.msra.mxu0 0.0
    %505 = vmatprep.subr.mxu0 0.0
    %506 = vmatpush2.msra.mxu0 0.0
    %507 = vmatprep.mubr.f32.mxu0 0.0
    %508 = vmatmul.mubr.f32.gmra.mxu0 %v441
    %v509 = vpop.f32.mrf.mxu0
    %v510 = vadd.f32 0.0, %v509
    %v511 = vpop.f32.mrf.mxu0
    %512 = vdwg.mxu0
    %v513 = vadd.f32 %v229, %v510
    %v514 = vxor.u32 %v513, 2147483648
    %v515 = vmul.f32 %v514, 1.442695
    %v516 = vpow.pop %v515
    %v517 = vadd.f32 %v516, 1.0
    %v518 = vrcp.pop %v517
    %v519 = vmul.f32 1.0, %v518
    %v520 = vtanh.pop %v513
    %v521 = vmul.f32 %v519, %v431
    %523 = vrot.lane.b32.xlu0 %v520, 32
    %v524 = vpop.permute.xlu0 %523
    %v526 = vmul.f32 %v519, %v524
    %528 = vrot.lane.b32.xlu0 %v526, 32
    %v529 = vpop.permute.xlu0 %528
    %v531 = vadd.f32 %v521, %v529
    %v532 = vtanh.pop %v531
    %534 = vrot.lane.b32.xlu0 %v532, 32
    %v535 = vpop.permute.xlu0 %534
    %v537 = vmul.f32 %v519, %v535
    %539 = vrot.lane.b32.xlu0 %v537, 64
    %v540 = vpop.permute.xlu0 %539
    %v541 = vsel %vm139, %v540, 0
    %543 = vmatprep.subr.mxu0 0.0
    %544 = vmatpush1.msra.mxu0 0.0
    %545 = vmatprep.subr.mxu0 0.0
    %546 = vmatpush1.msra.mxu0 0.0
    %547 = vmatprep.subr.mxu0 0.0
    %548 = vmatpush1.msra.mxu0 0.0
    %549 = vmatprep.subr.mxu0 0.0
    %550 = vmatpush1.msra.mxu0 0.0
    %551 = vmatprep.subr.mxu0 0.0
    %552 = vmatpush1.msra.mxu0 0.0
    %553 = vmatprep.subr.mxu0 0.0
    %554 = vmatpush1.msra.mxu0 0.0
    %555 = vmatprep.subr.mxu0 0.0
    %556 = vmatpush1.msra.mxu0 0.0
    %557 = vmatprep.subr.mxu0 0.0
    %558 = vmatpush1.msra.mxu0 0.0
    %559 = vmatprep.subr.mxu0 0.0
    %560 = vmatpush1.msra.mxu0 0.0
    %561 = vmatprep.subr.mxu0 0.0
    %562 = vmatpush1.msra.mxu0 0.0
    %563 = vmatprep.subr.mxu0 0.0
    %564 = vmatpush1.msra.mxu0 0.0
    %565 = vmatprep.subr.mxu0 0.0
    %566 = vmatpush1.msra.mxu0 0.0
    %567 = vmatprep.subr.mxu0 0.0
    %568 = vmatpush1.msra.mxu0 %v32
    %569 = vmatprep.subr.mxu0 0.0
    %570 = vmatpush1.msra.mxu0 %v31
    %571 = vmatprep.subr.mxu0 0.0
    %572 = vmatpush1.msra.mxu0 %v30
    %573 = vmatprep.subr.mxu0 0.0
    %574 = vmatpush1.msra.mxu0 %v29
    %575 = vmatprep.subr.mxu0 0.0
    %576 = vmatpush2.msra.mxu0 0.0
    %577 = vmatprep.subr.mxu0 0.0
    %578 = vmatpush2.msra.mxu0 0.0
    %579 = vmatprep.subr.mxu0 0.0
    %580 = vmatpush2.msra.mxu0 0.0
    %581 = vmatprep.subr.mxu0 0.0
    %582 = vmatpush2.msra.mxu0 0.0
    %583 = vmatprep.subr.mxu0 0.0
    %584 = vmatpush2.msra.mxu0 0.0
    %585 = vmatprep.subr.mxu0 0.0
    %586 = vmatpush2.msra.mxu0 0.0
    %587 = vmatprep.subr.mxu0 0.0
    %588 = vmatpush2.msra.mxu0 0.0
    %589 = vmatprep.subr.mxu0 0.0
    %590 = vmatpush2.msra.mxu0 0.0
    %591 = vmatprep.subr.mxu0 0.0
    %592 = vmatpush2.msra.mxu0 0.0
    %593 = vmatprep.subr.mxu0 0.0
    %594 = vmatpush2.msra.mxu0 0.0
    %595 = vmatprep.subr.mxu0 0.0
    %596 = vmatpush2.msra.mxu0 0.0
    %597 = vmatprep.subr.mxu0 0.0
    %598 = vmatpush2.msra.mxu0 0.0
    %599 = vmatprep.subr.mxu0 0.0
    %600 = vmatpush2.msra.mxu0 0.0
    %601 = vmatprep.subr.mxu0 0.0
    %602 = vmatpush2.msra.mxu0 0.0
    %603 = vmatprep.subr.mxu0 0.0
    %604 = vmatpush2.msra.mxu0 0.0
    %605 = vmatprep.subr.mxu0 0.0
    %606 = vmatpush2.msra.mxu0 0.0
    %607 = vmatprep.mubr.f32.mxu0 0.0
    %608 = vmatmul.mubr.f32.gmra.mxu0 %v541
    %v609 = vpop.f32.mrf.mxu0
    %v610 = vadd.f32 0.0, %v609
    %v611 = vpop.f32.mrf.mxu0
    %612 = vdwg.mxu0
    %v613 = vadd.f32 %v234, %v610
    %v614 = vxor.u32 %v613, 2147483648
    %v615 = vmul.f32 %v614, 1.442695
    %v616 = vpow.pop %v615
    %v617 = vadd.f32 %v616, 1.0
    %v618 = vrcp.pop %v617
    %v619 = vmul.f32 1.0, %v618
    %v620 = vtanh.pop %v613
    %v621 = vmul.f32 %v619, %v531
    %623 = vrot.lane.b32.xlu0 %v620, 32
    %v624 = vpop.permute.xlu0 %623
    %v626 = vmul.f32 %v619, %v624
    %628 = vrot.lane.b32.xlu0 %v626, 32
    %v629 = vpop.permute.xlu0 %628
    %v631 = vadd.f32 %v621, %v629
    %v632 = vtanh.pop %v631
    %634 = vrot.lane.b32.xlu0 %v632, 32
    %v635 = vpop.permute.xlu0 %634
    %v637 = vmul.f32 %v619, %v635
    %v638 = vlaneseq
    %v639 = vshrl.u32 %v638, 7
    %v640 = vsub.s32 0, %v639
    %v641 = vrot.slane %v41, %v640
    %643 = vrot.lane.b32.xlu0 %v637, 64
    %v644 = vpop.permute.xlu0 %643
    %v645 = vsel %vm139, %v644, 0
    %647 = vmatprep.subr.mxu0 0.0
    %648 = vmatpush1.msra.mxu0 0.0
    %649 = vmatprep.subr.mxu0 0.0
    %650 = vmatpush1.msra.mxu0 0.0
    %651 = vmatprep.subr.mxu0 0.0
    %652 = vmatpush1.msra.mxu0 0.0
    %653 = vmatprep.subr.mxu0 0.0
    %654 = vmatpush1.msra.mxu0 0.0
    %655 = vmatprep.subr.mxu0 0.0
    %656 = vmatpush1.msra.mxu0 0.0
    %657 = vmatprep.subr.mxu0 0.0
    %658 = vmatpush1.msra.mxu0 0.0
    %659 = vmatprep.subr.mxu0 0.0
    %660 = vmatpush1.msra.mxu0 0.0
    %661 = vmatprep.subr.mxu0 0.0
    %662 = vmatpush1.msra.mxu0 0.0
    %663 = vmatprep.subr.mxu0 0.0
    %664 = vmatpush1.msra.mxu0 0.0
    %665 = vmatprep.subr.mxu0 0.0
    %666 = vmatpush1.msra.mxu0 0.0
    %667 = vmatprep.subr.mxu0 0.0
    %668 = vmatpush1.msra.mxu0 0.0
    %669 = vmatprep.subr.mxu0 0.0
    %670 = vmatpush1.msra.mxu0 0.0
    %671 = vmatprep.subr.mxu0 0.0
    %672 = vmatpush1.msra.mxu0 %v40
    %673 = vmatprep.subr.mxu0 0.0
    %674 = vmatpush1.msra.mxu0 %v39
    %675 = vmatprep.subr.mxu0 0.0
    %676 = vmatpush1.msra.mxu0 %v38
    %677 = vmatprep.subr.mxu0 0.0
    %678 = vmatpush1.msra.mxu0 %v37
    %679 = vmatprep.subr.mxu0 0.0
    %680 = vmatpush2.msra.mxu0 0.0
    %681 = vmatprep.subr.mxu0 0.0
    %682 = vmatpush2.msra.mxu0 0.0
    %683 = vmatprep.subr.mxu0 0.0
    %684 = vmatpush2.msra.mxu0 0.0
    %685 = vmatprep.subr.mxu0 0.0
    %686 = vmatpush2.msra.mxu0 0.0
    %687 = vmatprep.subr.mxu0 0.0
    %688 = vmatpush2.msra.mxu0 0.0
    %689 = vmatprep.subr.mxu0 0.0
    %690 = vmatpush2.msra.mxu0 0.0
    %691 = vmatprep.subr.mxu0 0.0
    %692 = vmatpush2.msra.mxu0 0.0
    %693 = vmatprep.subr.mxu0 0.0
    %694 = vmatpush2.msra.mxu0 0.0
    %695 = vmatprep.subr.mxu0 0.0
    %696 = vmatpush2.msra.mxu0 0.0
    %697 = vmatprep.subr.mxu0 0.0
    %698 = vmatpush2.msra.mxu0 0.0
    %699 = vmatprep.subr.mxu0 0.0
    %700 = vmatpush2.msra.mxu0 0.0
    %701 = vmatprep.subr.mxu0 0.0
    %702 = vmatpush2.msra.mxu0 0.0
    %703 = vmatprep.subr.mxu0 0.0
    %704 = vmatpush2.msra.mxu0 0.0
    %705 = vmatprep.subr.mxu0 0.0
    %706 = vmatpush2.msra.mxu0 0.0
    %707 = vmatprep.subr.mxu0 0.0
    %708 = vmatpush2.msra.mxu0 0.0
    %709 = vmatprep.subr.mxu0 0.0
    %710 = vmatpush2.msra.mxu0 0.0
    %711 = vmatprep.mubr.f32.mxu0 0.0
    %712 = vmatmul.mubr.f32.gmra.mxu0 %v341
    %v713 = vpop.f32.mrf.mxu0
    %v714 = vadd.f32 %v641, %v713
    %v715 = vpop.f32.mrf.mxu0
    %716 = vmatprep.mubr.f32.mxu0 0.0
    %717 = vmatmul.mubr.f32.gmra.mxu0 %v441
    %v718 = vpop.f32.mrf.mxu0
    %v719 = vadd.f32 %v641, %v718
    %v720 = vpop.f32.mrf.mxu0
    %721 = vmatprep.mubr.f32.mxu0 0.0
    %722 = vmatmul.mubr.f32.gmra.mxu0 %v541
    %v723 = vpop.f32.mrf.mxu0
    %v724 = vadd.f32 %v641, %v723
    %v725 = vpop.f32.mrf.mxu0
    %726 = vmatprep.mubr.f32.mxu0 0.0
    %727 = vmatmul.mubr.f32.gmra.mxu0 %v645
    %v728 = vpop.f32.mrf.mxu0
    %v729 = vadd.f32 %v641, %v728
    %v730 = vpop.f32.mrf.mxu0
    %731 = vdwg.mxu0
    %v732 = vmax.f32 %v714, 0.0
    %v733 = vmax.f32 %v719, 0.0
    %v734 = vmax.f32 %v724, 0.0
    %v735 = vmax.f32 %v729, 0.0
    %v736 = vlaneseq
    %v737 = vshrl.u32 %v736, 7
    %v738 = vsub.s32 0, %v737
    %v739 = vrot.slane %v50, %v738
    %vm740 = vcmask 523264
    %v742 = vsel %vm740, %v732, 0
    %v745 = vsel %vm740, %v733, 0
    %v748 = vsel %vm740, %v734, 0
    %v751 = vsel %vm740, %v735, 0
    %753 = vmatprep.subr.mxu0 0.0
    %754 = vmatpush1.msra.mxu0 0.0
    %755 = vmatprep.subr.mxu0 0.0
    %756 = vmatpush1.msra.mxu0 0.0
    %757 = vmatprep.subr.mxu0 0.0
    %758 = vmatpush1.msra.mxu0 0.0
    %759 = vmatprep.subr.mxu0 0.0
    %760 = vmatpush1.msra.mxu0 0.0
    %761 = vmatprep.subr.mxu0 0.0
    %762 = vmatpush1.msra.mxu0 0.0
    %763 = vmatprep.subr.mxu0 0.0
    %764 = vmatpush1.msra.mxu0 0.0
    %765 = vmatprep.subr.mxu0 0.0
    %766 = vmatpush1.msra.mxu0 0.0
    %767 = vmatprep.subr.mxu0 0.0
    %768 = vmatpush1.msra.mxu0 0.0
    %769 = vmatprep.subr.mxu0 0.0
    %770 = vmatpush1.msra.mxu0 %v49
    %771 = vmatprep.subr.mxu0 0.0
    %772 = vmatpush1.msra.mxu0 %v48
    %773 = vmatprep.subr.mxu0 0.0
    %774 = vmatpush1.msra.mxu0 %v47
    %775 = vmatprep.subr.mxu0 0.0
    %776 = vmatpush1.msra.mxu0 %v46
    %777 = vmatprep.subr.mxu0 0.0
    %778 = vmatpush1.msra.mxu0 %v45
    %779 = vmatprep.subr.mxu0 0.0
    %780 = vmatpush1.msra.mxu0 %v44
    %781 = vmatprep.subr.mxu0 0.0
    %782 = vmatpush1.msra.mxu0 %v43
    %783 = vmatprep.subr.mxu0 0.0
    %784 = vmatpush1.msra.mxu0 %v42
    %785 = vmatprep.subr.mxu0 0.0
    %786 = vmatpush2.msra.mxu0 0.0
    %787 = vmatprep.subr.mxu0 0.0
    %788 = vmatpush2.msra.mxu0 0.0
    %789 = vmatprep.subr.mxu0 0.0
    %790 = vmatpush2.msra.mxu0 0.0
    %791 = vmatprep.subr.mxu0 0.0
    %792 = vmatpush2.msra.mxu0 0.0
    %793 = vmatprep.subr.mxu0 0.0
    %794 = vmatpush2.msra.mxu0 0.0
    %795 = vmatprep.subr.mxu0 0.0
    %796 = vmatpush2.msra.mxu0 0.0
    %797 = vmatprep.subr.mxu0 0.0
    %798 = vmatpush2.msra.mxu0 0.0
    %799 = vmatprep.subr.mxu0 0.0
    %800 = vmatpush2.msra.mxu0 0.0
    %801 = vmatprep.subr.mxu0 0.0
    %802 = vmatpush2.msra.mxu0 0.0
    %803 = vmatprep.subr.mxu0 0.0
    %804 = vmatpush2.msra.mxu0 0.0
    %805 = vmatprep.subr.mxu0 0.0
    %806 = vmatpush2.msra.mxu0 0.0
    %807 = vmatprep.subr.mxu0 0.0
    %808 = vmatpush2.msra.mxu0 0.0
    %809 = vmatprep.subr.mxu0 0.0
    %810 = vmatpush2.msra.mxu0 0.0
    %811 = vmatprep.subr.mxu0 0.0
    %812 = vmatpush2.msra.mxu0 0.0
    %813 = vmatprep.subr.mxu0 0.0
    %814 = vmatpush2.msra.mxu0 0.0
    %815 = vmatprep.subr.mxu0 0.0
    %816 = vmatpush2.msra.mxu0 0.0
    %817 = vmatprep.mubr.f32.mxu0 0.0
    %818 = vmatmul.mubr.f32.gmra.mxu0 %v742
    %v819 = vpop.f32.mrf.mxu0
    %v820 = vadd.f32 %v739, %v819
    %v821 = vpop.f32.mrf.mxu0
    %822 = vmatprep.mubr.f32.mxu0 0.0
    %823 = vmatmul.mubr.f32.gmra.mxu0 %v745
    %v824 = vpop.f32.mrf.mxu0
    %v825 = vadd.f32 %v739, %v824
    %v826 = vpop.f32.mrf.mxu0
    %827 = vmatprep.mubr.f32.mxu0 0.0
    %828 = vmatmul.mubr.f32.gmra.mxu0 %v748
    %v829 = vpop.f32.mrf.mxu0
    %v830 = vadd.f32 %v739, %v829
    %v831 = vpop.f32.mrf.mxu0
    %832 = vmatprep.mubr.f32.mxu0 0.0
    %833 = vmatmul.mubr.f32.gmra.mxu0 %v751
    %v834 = vpop.f32.mrf.mxu0
    %v835 = vadd.f32 %v739, %v834
    %v836 = vpop.f32.mrf.mxu0
    %837 = vdwg.mxu0
    %v838 = vxor.u32 %v820, 2147483648
    %v839 = vxor.u32 %v825, 2147483648
    %v840 = vxor.u32 %v830, 2147483648
    %v841 = vxor.u32 %v835, 2147483648
    %v842 = vmul.f32 %v838, 1.442695
    %v843 = vpow.pop %v842
    %v844 = vmul.f32 %v839, 1.442695
    %v845 = vpow.pop %v844
    %v846 = vmul.f32 %v840, 1.442695
    %v847 = vpow.pop %v846
    %v848 = vmul.f32 %v841, 1.442695
    %v849 = vpow.pop %v848
    %v850 = vadd.f32 %v843, 1.0
    %v851 = vadd.f32 %v845, 1.0
    %v852 = vadd.f32 %v847, 1.0
    %v853 = vadd.f32 %v849, 1.0
    %v854 = vrcp.pop %v850
    %v855 = vmul.f32 1.0, %v854
    %v856 = vrcp.pop %v851
    %v857 = vmul.f32 1.0, %v856
    %v858 = vrcp.pop %v852
    %v859 = vmul.f32 1.0, %v858
    %v860 = vrcp.pop %v853
    %v861 = vmul.f32 1.0, %v860
    %v862 = vmul.f32 %v855, 0.5
    %v863 = vmul.f32 %v857, 0.5
    %v864 = vmul.f32 %v859, 0.5
    %v865 = vmul.f32 %v861, 0.5
    %v866 = vsel %vm60, %v820, %v862
    %v867 = vsel %vm60, %v825, %v863
    %v868 = vsel %vm60, %v830, %v864
    %v869 = vsel %vm60, %v835, %v865
    %870 = vst.msk [vmem:[%s2] sm:$0xff] %vm139, %v866
    %871 = vst.msk [vmem:[%s2 + $0x8] sm:$0xff] %vm139, %v867
    %872 = vst.msk [vmem:[%s2 + $0x10] sm:$0xff] %vm139, %v868
    %873 = vst.msk [vmem:[%s2 + $0x18] sm:$0xff] %vm139, %v869
    // Predicated region
    $region14: #{decoder_forward.1} parent=1 // pred_check
      _
    $region15: #{decoder_forward.1} parent=1 // pred_check_branch
      %875 = sbr.rel (0) target = $region17
    $region16: #{decoder_forward.1} parent=1 // pred_region
      _
    $region17: #{decoder_forward.1} parent=1 // pred_fallthru
      _
    // Predicated region
    $region18: #{decoder_forward.1} parent=1 // pred_check
      _
    $region19: #{decoder_forward.1} parent=1 // pred_check_branch
      %877 = sbr.rel (0) target = $region21
    $region20: #{decoder_forward.1} parent=1 // pred_region
      _
    $region21: #{decoder_forward.1} parent=1 // pred_fallthru
      _
    %878 = vsyncpa [#allocation3], 1

</llo_original>
